<compile_context>
chip_gen: v7x
topology: tpu7x:2x2x1
jax: 0.10.0
libtpu: 0.0.40
codegen_flags: <defaults>
</compile_context>

<pallas_src>
import functools
import math

import jax
import jax.numpy as jnp
from jax import lax
from jax.experimental import pallas as pl
from jax.experimental.pallas import tpu as pltpu


def _round_up(x, m):
    return ((x + m - 1) // m) * m


@functools.lru_cache(maxsize=None)
def _vmem_budget_bytes():
    """Per-core VMEM budget for kernel buffers (trace-time, device-derived)."""
    try:
        cap = int(pltpu.get_tpu_info().vmem_capacity_bytes)
    except Exception:
        cap = 64 * 1024 * 1024          # conservative: v7x has 64 MiB per TC
    budget = (cap * 3) // 4             # leave headroom for compiler scratch
    return max(32 * 1024 * 1024, min(96 * 1024 * 1024, budget))


def _phase_matmul_kernel(w_ref, b_ref, a_ref, o_ref):
    # out[P, tm] = W[P, KK] @ A[KK, tm] + bias[P, 1]
    # bf16 operands, exact f32 accumulation, bf16 store (halves output stream).
    acc = jnp.dot(w_ref[...], a_ref[...], preferred_element_type=jnp.float32)
    o_ref[...] = (acc + b_ref[...]).astype(o_ref.dtype)


def _pallas_phase_matmul(w_mat, bias_col, a_t, *, tm, out_dtype):
    p_rows, kk = w_mat.shape
    _, m = a_t.shape
    in_b = jnp.dtype(a_t.dtype).itemsize
    w_b = jnp.dtype(w_mat.dtype).itemsize
    out_b = jnp.dtype(out_dtype).itemsize

    # --- tile size from the actual VMEM buffer budget ------------------------
    budget = _vmem_budget_bytes()
    # Residents (W, bias) are still double-buffered by BlockSpec; streamed A
    # and O tiles are double-buffered by the pipeline.
    fixed = 2 * (p_rows * kk * w_b + p_rows * 4)
    per_col = 2 * (kk * in_b + p_rows * out_b)
    tm_budget = max(128, ((budget - fixed) // max(per_col, 1)) // 128 * 128)
    tm_cap = max(128, min(tm, tm_budget))
    # Guarantee >= 2 parallel M steps so both v7x TensorCores get work.
    n_steps = max(2, pl.cdiv(m, tm_cap))
    tm_eff = max(128, _round_up(pl.cdiv(m, n_steps), 128))
    grid = (pl.cdiv(m, tm_eff),)

    cost = pl.CostEstimate(
        flops=2 * p_rows * kk * m,
        transcendentals=0,
        bytes_accessed=kk * m * in_b + p_rows * m * out_b
        + p_rows * (kk * w_b + 4),
    )

    return pl.pallas_call(
        _phase_matmul_kernel,
        out_shape=jax.ShapeDtypeStruct((p_rows, m), out_dtype),
        grid_spec=pltpu.PrefetchScalarGridSpec(
            num_scalar_prefetch=0,
            grid=grid,
            in_specs=[
                pl.BlockSpec((p_rows, kk), lambda i: (0, 0)),   # resident W
                pl.BlockSpec((p_rows, 1), lambda i: (0, 0)),    # resident bias
                pl.BlockSpec((kk, tm_eff), lambda i: (0, i)),   # streamed taps
            ],
            out_specs=pl.BlockSpec((p_rows, tm_eff), lambda i: (0, i)),
        ),
        compiler_params=pltpu.CompilerParams(
            dimension_semantics=("parallel",),
            vmem_limit_bytes=int(budget),
        ),
        cost_estimate=cost,
    )(w_mat, bias_col, a_t)


@functools.partial(
    jax.jit,
    static_argnames=("kernel_size", "stride", "padding", "tm", "compute_dtype",
                     "out_dtype"))
def _deconv2d_forward(x, weight, bias, *, kernel_size, stride, padding, tm,
                      compute_dtype, out_dtype):
    n, c_in, h, w = x.shape
    c_out = weight.shape[1]
    k, s, p = kernel_size, stride, padding
    h_out = (h - 1) * s - 2 * p + k
    w_out = (w - 1) * s - 2 * p + k

    t = -(-k // s)                       # max taps per phase = ceil(k/s)
    base_min = p // s
    off = p - s * base_min               # = p % s, output pixel-shuffle offset

    def _extent(in_len, out_len):
        b = -(-(out_len + p) // s) - base_min          # #base positions
        lo = max(0, (t - 1) - base_min)                # left zero pad of x
        hi = max(0, (b - 1) + base_min - (in_len - 1)) # right zero pad of x
        return b, lo, hi

    bh, lo_h, hi_h = _extent(h, h_out)
    bw, lo_w, hi_w = _extent(w, w_out)

    # Cast to the compute dtype *before* any layout work (halves pre-pass HBM
    # bytes) and transpose x itself (small) instead of the T^2-sized stack.
    x_b = x.astype(compute_dtype)                         # [N, Cin, H, W]
    x_t = jnp.transpose(x_b, (1, 0, 2, 3))                # [Cin, N, H, W]
    x_pad = jnp.pad(x_t, ((0, 0), (0, 0), (lo_h, hi_h), (lo_w, hi_w)))

    # Sub-pixel taps: for output base (b, b') and tap (th, tw), the
    # contributing input pixel is ih = b + base_min - th, iw = b' + base_min - tw.
    taps = []
    for th in range(t):
        sh = lo_h + base_min - th
        for tw in range(t):
            sw = lo_w + base_min - tw
            taps.append(lax.slice(
                x_pad, (0, 0, sh, sw), (c_in, n, sh + bh, sw + bw)))
    a = jnp.stack(taps, axis=0)                           # [T*T, Cin, N, Bh, Bw]
    m_cols = n * bh * bw
    a_t = a.reshape(t * t * c_in, m_cols)                 # bitcast reshape

    # Pack weights per output phase (rh, rw) and tap (th, tw):
    # kh = rh + s*th, kw = rw + s*tw (zero beyond k). PyTorch layout is
    # [Cin, Cout, kH, kW]; no kernel flip is needed in this formulation.
    w_p = jnp.pad(weight, ((0, 0), (0, 0), (0, s * t - k), (0, s * t - k)))
    w_r = w_p.reshape(c_in, c_out, t, s, t, s)            # (ci, co, th, rh, tw, rw)
    w_mat = jnp.transpose(w_r, (3, 5, 1, 2, 4, 0))        # (rh, rw, co, th, tw, ci)
    w_mat = w_mat.reshape(s * s * c_out, t * t * c_in).astype(compute_dtype)

    bias_col = jnp.tile(bias.astype(jnp.float32), s * s).reshape(-1, 1)

    # Pad packed dims for unmasked vector access (no-op when already aligned).
    p_rows = s * s * c_out
    kk = t * t * c_in
    p_pad = _round_up(p_rows, 16)
    kk_pad = _round_up(kk, 16)
    if kk_pad != kk:
        a_t = jnp.pad(a_t, ((0, kk_pad - kk), (0, 0)))
    if p_pad != p_rows or kk_pad != kk:
        w_mat = jnp.pad(w_mat, ((0, p_pad - p_rows), (0, kk_pad - kk)))
    if p_pad != p_rows:
        bias_col = jnp.pad(bias_col, ((0, p_pad - p_rows), (0, 0)))

    y = _pallas_phase_matmul(w_mat, bias_col, a_t, tm=tm,
                             out_dtype=compute_dtype)     # [P_pad, M] bf16
    if p_pad != p_rows:
        y = y[:p_rows]

    # Pixel-shuffle back to NCHW (in bf16): out[n, co, s*b + rh - off, ...]
    y = y.reshape(s, s, c_out, n, bh, bw)
    y = jnp.transpose(y, (3, 2, 4, 0, 5, 1))              # (n, co, b, rh, b', rw)
    y = y.reshape(n, c_out, s * bh, s * bw)
    y = lax.slice(y, (0, 0, off, off), (n, c_out, off + h_out, off + w_out))
    return y.astype(out_dtype)


class Deconv2D:
    """JAX/Pallas port of the PyTorch Deconv2D module (ConvTranspose2d)."""

    def __init__(self, in_channels, out_channels, kernel_size, stride, key,
                 compute_dtype=jnp.bfloat16, out_dtype=jnp.float32, tm=2048):
        self.in_channels = in_channels
        self.out_channels = out_channels
        self.kernel_size = kernel_size
        self.stride = stride
        self.padding = (kernel_size - 1) // 2
        self.compute_dtype = compute_dtype
        self.out_dtype = out_dtype
        self.tm = tm
        w_key, b_key = jax.random.split(key)
        # PyTorch ConvTranspose2d weight layout: [C_in, C_out, kH, kW]
        fan_in = out_channels * kernel_size * kernel_size
        bound = 1.0 / math.sqrt(fan_in)
        self.weight = jax.random.uniform(
            w_key, (in_channels, out_channels, kernel_size, kernel_size),
            jnp.float32, -bound, bound)
        self.bias = jax.random.uniform(
            b_key, (out_channels,), jnp.float32, -bound, bound)

    def __call__(self, x):
        return _deconv2d_forward(
            x, self.weight, self.bias,
            kernel_size=self.kernel_size, stride=self.stride,
            padding=self.padding, tm=self.tm,
            compute_dtype=self.compute_dtype, out_dtype=self.out_dtype)


def reference_conv_transpose(x, weight, bias, stride, padding):
    """Independent reference via lax.conv_general_dilated (NCHW, OIHW)."""
    k = weight.shape[2]
    w_rot = jnp.transpose(jnp.flip(weight, axis=(2, 3)), (1, 0, 2, 3))
    p_eff = k - 1 - padding
    out = lax.conv_general_dilated(
        x, w_rot, window_strides=(1, 1),
        padding=[(p_eff, p_eff), (p_eff, p_eff)],
        lhs_dilation=(stride, stride),
        dimension_numbers=('NCHW', 'OIHW', 'NCHW'))
    return out + bias[None, :, None, None]


if __name__ == "__main__":
    key = jax.random.PRNGKey(0)

    def _check(n, c_in, c_out, h, w, kernel, stride, subkey):
        k_param, k_x = jax.random.split(subkey)
        x = jax.random.normal(k_x, (n, c_in, h, w), jnp.float32)
        module = Deconv2D(c_in, c_out, kernel, stride, k_param)
        out = jax.block_until_ready(module(x))
        # Reference on bf16-rounded inputs: kernel streams A/W in bf16 with
        # exact f32 accumulation; the remaining differences are summation
        # order plus one bf16 rounding of the accumulator at the store.
        x_ref = x.astype(module.compute_dtype).astype(jnp.float32)
        w_ref = module.weight.astype(module.compute_dtype).astype(jnp.float32)
        ref = jax.block_until_ready(
            reference_conv_transpose(x_ref, w_ref, module.bias, stride,
                                     module.padding))
        assert out.shape == ref.shape, (out.shape, ref.shape)
        max_err = float(jnp.max(jnp.abs(out - ref)))
        assert max_err < 2e-2, (kernel, stride, max_err)

    k0, k1, k2 = jax.random.split(key, 3)
    _check(2, 4, 8, 16, 16, 3, 2, k0)   # main shape from the module spec
    _check(1, 3, 5, 8, 8, 4, 2, k1)     # even kernel, unaligned P/KK padding
    _check(1, 3, 5, 8, 8, 3, 1, k2)     # stride-1 branch
    print("KERNEL_OK")
</pallas_src>

<mosaic_0001>
module attributes {stable_mosaic.version = 11 : i64} {
  func.func @_phase_matmul_kernel(%arg0: i32, %arg1: memref<32x16xbf16, #tpu.memory_space<vmem>>, %arg2: memref<32x1xf32, #tpu.memory_space<vmem>>, %arg3: memref<16x256xbf16, #tpu.memory_space<vmem>>, %arg4: memref<32x256xbf16, #tpu.memory_space<vmem>>) attributes {dimension_semantics = [#tpu.dimension_semantics<parallel>], iteration_bounds = array<i64: 2>, scalar_prefetch = 0 : i64, scratch_operands = 0 : i64, tpu.core_type = #tpu.core_type<tc>, window_params = [{pipeline_mode = #tpu.pipeline_mode<synchronous>, transform_indices = @transform_0, window_bounds = array<i64: 32, 16>}, {pipeline_mode = #tpu.pipeline_mode<synchronous>, transform_indices = @transform_1, window_bounds = array<i64: 32, 1>}, {transform_indices = @transform_2, window_bounds = array<i64: 16, 256>}, {transform_indices = @transform_3, window_bounds = array<i64: 32, 256>}]} {
    %c0 = arith.constant 0 : index
    %c0_0 = arith.constant 0 : index
    %0 = vector.load %arg1[%c0, %c0_0] : memref<32x16xbf16, #tpu.memory_space<vmem>>, vector<32x16xbf16>
    %c0_1 = arith.constant 0 : index
    %c0_2 = arith.constant 0 : index
    %1 = vector.load %arg3[%c0_1, %c0_2] : memref<16x256xbf16, #tpu.memory_space<vmem>>, vector<16x256xbf16>
    %cst = arith.constant dense<0.000000e+00> : vector<32x256xf32>
    %2 = tpu.matmul %0, %1, %cst {dimension_numbers = #tpu.dot_dimension_numbers<[1], [0], [0], [1], [0, 0, 1, 1], [], []>} : vector<32x16xbf16>, vector<16x256xbf16>, vector<32x256xf32> -> vector<32x256xf32>
    %c0_3 = arith.constant 0 : index
    %c0_4 = arith.constant 0 : index
    %3 = vector.load %arg2[%c0_3, %c0_4] : memref<32x1xf32, #tpu.memory_space<vmem>>, vector<32x1xf32>
    %4 = vector.broadcast %3 : vector<32x1xf32> to vector<32x256xf32>
    %5 = arith.addf %2, %4 : vector<32x256xf32>
    %6 = arith.truncf %5 : vector<32x256xf32> to vector<32x256xbf16>
    %c0_5 = arith.constant 0 : index
    %c0_6 = arith.constant 0 : index
    %7 = vector.load %arg4[%c0_5, %c0_6] : memref<32x256xbf16, #tpu.memory_space<vmem>>, vector<32x256xbf16>
    tpu.vector_store %arg4[%c0_5, %c0_6], %6 {strides = array<i32>} : memref<32x256xbf16, #tpu.memory_space<vmem>>, vector<32x256xbf16>,
    return
  }
  func.func @transform_0(%arg0: i32) -> (i32, i32) {
    %c0_i32 = arith.constant 0 : i32
    %c0_i32_0 = arith.constant 0 : i32
    %c0_i32_1 = arith.constant 0 : i32
    return %c0_i32, %c0_i32_0 : i32, i32
  }
  func.func @transform_1(%arg0: i32) -> (i32, i32) {
    %c0_i32 = arith.constant 0 : i32
    %c0_i32_0 = arith.constant 0 : i32
    %c0_i32_1 = arith.constant 0 : i32
    return %c0_i32, %c0_i32_0 : i32, i32
  }
  func.func @transform_2(%arg0: i32) -> (i32, i32) {
    %c0_i32 = arith.constant 0 : i32
    %c0_i32_0 = arith.constant 0 : i32
    return %c0_i32, %arg0 : i32, i32
  }
  func.func @transform_3(%arg0: i32) -> (i32, i32) {
    %c0_i32 = arith.constant 0 : i32
    %c0_i32_0 = arith.constant 0 : i32
    return %c0_i32, %arg0 : i32, i32
  }
}

</mosaic_0001>

<llo_original>
// kernel: tile.8
$region0: #{tile.8}
  #allocation0 [shape = 's32[1]{0}', space=sflag, size = 0x4, scoped, tag = 'scoped memory for tile.8']
  %s0 = inlined_call_operand.vmem [shape: f32[8], index: 0, kind: input, shape index: {}]
  %s1 = inlined_call_operand.vmem [shape: f32[4,8], index: 1, kind: output, shape index: {}]
  // Predicated region
  $region2: #{tile.8} parent=0 // pred_check
    _
  $region3: #{tile.8} parent=0 // pred_check_branch
    %3 = sbr.rel (0) target = $region5
  $region4: #{tile.8} parent=0 // pred_region
    _
  $region5: #{tile.8} parent=0 // pred_fallthru
    _
  %v4 = vld [vmem:[%s0] ss:$0 sm:$0xff]
  %5 = vst [vmem:[%s1] sm:$0xf] %v4

// kernel: tile.0
$region0: #{tile.0}
  %s0 = inlined_call_operand.vmem [shape: f32[4,8], index: 0, kind: input, shape index: {}]
  %s1 = inlined_call_operand.vmem [shape: f32[32,1], index: 1, kind: output, shape index: {}]
  $region1: #{tile.0} parent=0
    #allocation0 [shape = 'u8[4096]{0}', space=vmem, size = 0x1000, scoped, tag = 'scoped mem for input reshape']
    %s3 = sshllo.u32 0, 4
    %v4 = vld [vmem:[%s0] sm:%s3]
    %5 = vst [vmem:[#allocation0] sm:%s3] %v4
    %v6 = vld [vmem:[#allocation0] sm:$0xf]
    %vm7 = vcmask 7168
    %8 = vst.msk [vmem:[%s1] ss:$8 sm:$0xf] %vm7, %v6
    %v9 = vld [vmem:[#allocation0] sm:$0xf]
    %10 = vrot.lane.b32.xlu0 %v9, 127
    %v11 = vpop.permute.xlu0 %10
    %vm12 = vcmask 7168
    %s13 = scalar_lea.vmem %s1, 1
    %14 = vst.msk [vmem:[%s13] ss:$8 sm:$0xf] %vm12, %v11
    %v15 = vld [vmem:[#allocation0] sm:$0xf]
    %16 = vrot.lane.b32.xlu0 %v15, 126
    %v17 = vpop.permute.xlu0 %16
    %vm18 = vcmask 7168
    %s19 = scalar_lea.vmem %s1, 2
    %20 = vst.msk [vmem:[%s19] ss:$8 sm:$0xf] %vm18, %v17
    %v21 = vld [vmem:[#allocation0] sm:$0xf]
    %22 = vrot.lane.b32.xlu0 %v21, 125
    %v23 = vpop.permute.xlu0 %22
    %vm24 = vcmask 7168
    %s25 = scalar_lea.vmem %s1, 3
    %26 = vst.msk [vmem:[%s25] ss:$8 sm:$0xf] %vm24, %v23
    %v27 = vld [vmem:[#allocation0] sm:$0xf]
    %28 = vrot.lane.b32.xlu0 %v27, 124
    %v29 = vpop.permute.xlu0 %28
    %vm30 = vcmask 7168
    %s31 = scalar_lea.vmem %s1, 4
    %32 = vst.msk [vmem:[%s31] ss:$8 sm:$0xf] %vm30, %v29
    %v33 = vld [vmem:[#allocation0] sm:$0xf]
    %34 = vrot.lane.b32.xlu0 %v33, 123
    %v35 = vpop.permute.xlu0 %34
    %vm36 = vcmask 7168
    %s37 = scalar_lea.vmem %s1, 5
    %38 = vst.msk [vmem:[%s37] ss:$8 sm:$0xf] %vm36, %v35
    %v39 = vld [vmem:[#allocation0] sm:$0xf]
    %40 = vrot.lane.b32.xlu0 %v39, 122
    %v41 = vpop.permute.xlu0 %40
    %vm42 = vcmask 7168
    %s43 = scalar_lea.vmem %s1, 6
    %44 = vst.msk [vmem:[%s43] ss:$8 sm:$0xf] %vm42, %v41
    %v45 = vld [vmem:[#allocation0] sm:$0xf]
    %46 = vrot.lane.b32.xlu0 %v45, 121
    %v47 = vpop.permute.xlu0 %46
    %vm48 = vcmask 7168
    %s49 = scalar_lea.vmem %s1, 7
    %50 = vst.msk [vmem:[%s49] ss:$8 sm:$0xf] %vm48, %v47

// kernel: _deconv2d_forward.1
$region0: #{_deconv2d_forward.1}
  #allocation0 [shape = 'u32[]', space=smem, size = 0x4, offset = 0x4, fixed_abs, tag = 'smem constant byte address 0x4 - core index']
  #allocation1 [shape = 'u32[144,128]{1,0:T(1,128)}', space=vmem, size = 0x12000, scoped, tag = 'internal scratch']
  %s0 = inlined_call_operand.vmem [shape: bf16[32,16], index: 0, kind: input, shape index: {}]
  %s1 = inlined_call_operand.vmem [shape: f32[32,1], index: 1, kind: input, shape index: {}]
  %s2 = inlined_call_operand.vmem [shape: bf16[16,512], index: 2, kind: input, shape index: {}]
  %s3 = inlined_call_operand.vmem [shape: bf16[32,512], index: 3, kind: output, shape index: {}]
  %s4 = sld [smem:[#allocation0]]
  $region117: #{_deconv2d_forward.1} parent=0
    _
  %s6 = ssub.s32 1, %s4
  %s7 = scalar_select 0, %s6, %s4
  $region1: #{_deconv2d_forward.1} parent=0
    #allocation2 [shape = 'u8[16384]{0}', space=vmem, size = 0x4000, scoped, tag = 'input window, operand 2']
    #allocation3 [shape = 'u8[32768]{0}', space=vmem, size = 0x8000, scoped, tag = 'output window, operand 0']
    loop: start=0, step=1, limit=4
    $region2: #{_deconv2d_forward.1} parent=1 // loop_pre_header
      _
    $region3: #{_deconv2d_forward.1} parent=1 // loop_header
      %s9 = sphi 0, %s13
      %p10 = scmp.ge.s32.totalorder %s9, 4
      %s17 = sphi 0, %s17
      %s19 = sphi 0, %s17
      %s20 = sphi 0, %s19
      %s34 = sphi 0, %s20
      %s38 = sphi 0, %s38
      %s40 = sphi 0, %s38
      %s41 = sphi 0, %s40
      %s55 = sphi 0, %s41
      %s61 = sphi 0, %s63
      %s64 = sphi 0, %s61
      %s65 = sphi 0, %s64
      %s81 = sphi 0, %s65
      %s87 = sphi 0, %s89
      %s90 = sphi 0, %s87
      %s91 = sphi 0, %s90
      %s107 = sphi 0, %s91
    $region4: #{_deconv2d_forward.1} parent=1 // loop_header_branch
      %12 = sbr.rel (%p10) target = $region8
    $region5: #{_deconv2d_forward.1} parent=1 // loop_body
      %s14 = ssub.s32 %s9, 1
      %s15 = ssub.s32 %s9, 2
      %s16 = sadd.s32 %s9, 1
      %s18 = sadd.s32 %s17, 1
      %p21 = scmp.eq.s32.totalorder %s9, 1
      %p22 = scmp.ne.s32.totalorder %s17, %s19
      %p23 = scmp.eq.s32.totalorder %s9, 0
      %p24 = por %p22, %p23
      %p25 = scmp.ne.s32.totalorder %s17, %s19
      %p26 = scmp.eq.s32.totalorder %s14, 1
      %p27 = por %p25, %p26
      %p28 = scmp.ne.s32.totalorder %s19, %s20
      %p29 = scmp.eq.s32.totalorder %s14, 0
      %p30 = por %p28, %p29
      %p31 = scmp.ne.s32.totalorder %s19, %s20
      %p32 = scmp.eq.s32.totalorder %s15, 1
      %p33 = por %p31, %p32
      %p35 = scmp.ne.s32.totalorder %s20, %s34
      %p36 = scmp.eq.s32.totalorder %s15, 0
      %p37 = por %p35, %p36
      %s39 = sadd.s32 %s38, 1
      %p42 = scmp.eq.s32.totalorder %s9, 1
      %p43 = scmp.ne.s32.totalorder %s38, %s40
      %p44 = scmp.eq.s32.totalorder %s9, 0
      %p45 = por %p43, %p44
      %p46 = scmp.ne.s32.totalorder %s38, %s40
      %p47 = scmp.eq.s32.totalorder %s14, 1
      %p48 = por %p46, %p47
      %p49 = scmp.ne.s32.totalorder %s40, %s41
      %p50 = scmp.eq.s32.totalorder %s14, 0
      %p51 = por %p49, %p50
      %p52 = scmp.ne.s32.totalorder %s40, %s41
      %p53 = scmp.eq.s32.totalorder %s15, 1
      %p54 = por %p52, %p53
      %p56 = scmp.ne.s32.totalorder %s41, %s55
      %p57 = scmp.eq.s32.totalorder %s15, 0
      %p58 = por %p56, %p57
      %s59 = ssub.s32 %s9, %s16
      %p60 = scmp.eq.s32.totalorder %s59, 0
      %s62 = sadd.s32 %s61, 1
      %s63 = scalar_select %p60, %s61, %s62
      %p66 = pneg %p60
      %p67 = scmp.eq.s32.totalorder %s9, 1
      %p68 = por %p66, %p67
      %p69 = scmp.ne.s32.totalorder %s61, %s64
      %p70 = scmp.eq.s32.totalorder %s9, 0
      %p71 = por %p69, %p70
      %p72 = scmp.ne.s32.totalorder %s61, %s64
      %p73 = scmp.eq.s32.totalorder %s14, 1
      %p74 = por %p72, %p73
      %p75 = scmp.ne.s32.totalorder %s64, %s65
      %p76 = scmp.eq.s32.totalorder %s14, 0
      %p77 = por %p75, %p76
      %p78 = scmp.ne.s32.totalorder %s64, %s65
      %p79 = scmp.eq.s32.totalorder %s15, 1
      %p80 = por %p78, %p79
      %p82 = scmp.ne.s32.totalorder %s65, %s81
      %p83 = scmp.eq.s32.totalorder %s15, 0
      %p84 = por %p82, %p83
      %s85 = ssub.s32 %s9, %s16
      %p86 = scmp.eq.s32.totalorder %s85, 0
      %s88 = sadd.s32 %s87, 1
      %s89 = scalar_select %p86, %s87, %s88
      %p92 = pneg %p86
      %p93 = scmp.eq.s32.totalorder %s9, 1
      %p94 = por %p92, %p93
      %p95 = scmp.ne.s32.totalorder %s87, %s90
      %p96 = scmp.eq.s32.totalorder %s9, 0
      %p97 = por %p95, %p96
      %p98 = scmp.ne.s32.totalorder %s87, %s90
      %p99 = scmp.eq.s32.totalorder %s14, 1
      %p100 = por %p98, %p99
      %p101 = scmp.ne.s32.totalorder %s90, %s91
      %p102 = scmp.eq.s32.totalorder %s14, 0
      %p103 = por %p101, %p102
      %p104 = scmp.ne.s32.totalorder %s90, %s91
      %p105 = scmp.eq.s32.totalorder %s15, 1
      %p106 = por %p104, %p105
      %p108 = scmp.ne.s32.totalorder %s91, %s107
      %p109 = scmp.eq.s32.totalorder %s15, 0
      %p110 = por %p108, %p109
      %p111 = scmp.le.s32.totalorder 1, %s9
      %p112 = scmp.lt.s32.totalorder %s9, 3
      %p113 = pnand %p111, %p112
      %p114 = pneg %p113
      // Predicated region
      $region9: #{_deconv2d_forward.1} parent=5 // pred_check
        _
      $region10: #{_deconv2d_forward.1} parent=5 // pred_check_branch
        %116 = sbr.rel (%p113) target = $region12
      $region11: #{_deconv2d_forward.1} parent=5 // pred_region
        %s117 = ssub.s32 %s9, 1
        // Predicated region
        $region13: #{_deconv2d_forward.1} parent=11 // pred_check
          %p118 = pneg %p30
        $region14: #{_deconv2d_forward.1} parent=11 // pred_check_branch
          %120 = sbr.rel (%p118) target = $region16
        $region15: #{_deconv2d_forward.1} parent=11 // pred_region
          _
        $region16: #{_deconv2d_forward.1} parent=11 // pred_fallthru
          _
        // Predicated region
        $region17: #{_deconv2d_forward.1} parent=11 // pred_check
          %p121 = pneg %p51
        $region18: #{_deconv2d_forward.1} parent=11 // pred_check_branch
          %123 = sbr.rel (%p121) target = $region20
        $region19: #{_deconv2d_forward.1} parent=11 // pred_region
          _
        $region20: #{_deconv2d_forward.1} parent=11 // pred_fallthru
          _
      $region12: #{_deconv2d_forward.1} parent=5 // pred_fallthru
        _
      %p124 = scmp.lt.s32.totalorder %s9, 2
      // Predicated region
      $region21: #{_deconv2d_forward.1} parent=5 // pred_check
        %p125 = pneg %p124
      $region22: #{_deconv2d_forward.1} parent=5 // pred_check_branch
        %127 = sbr.rel (%p125) target = $region24
      $region23: #{_deconv2d_forward.1} parent=5 // pred_region
        // Predicated region
        $region25: #{_deconv2d_forward.1} parent=23 // pred_check
          %p128 = pneg %p71
        $region26: #{_deconv2d_forward.1} parent=23 // pred_check_branch
          %130 = sbr.rel (%p128) target = $region28
        $region27: #{_deconv2d_forward.1} parent=23 // pred_region
          %s131 = sand.u32 %s61, 1
          %s132 = sand.u32 %s61, 1
          %s133 = smul.addr %s132, 16
          %s134 = scalar_lea.vmem [#allocation2], %s133
          %s135 = smul.u32 2, %s9
          %s136 = smul.addr %s135, 4
          %s137 = scalar_lea.vmem %s2, %s136
          // Predicated region
          $region29: #{_deconv2d_forward.1} parent=27 // pred_check
            _
          $region30: #{_deconv2d_forward.1} parent=27 // pred_check_branch
            %139 = sbr.rel (0) target = $region32
          $region31: #{_deconv2d_forward.1} parent=27 // pred_region
            // Predicated region
            $region33: #{_deconv2d_forward.1} parent=31 // pred_check
              _
            $region34: #{_deconv2d_forward.1} parent=31 // pred_check_branch
              %141 = sbr.rel (0) target = $region36
            $region35: #{_deconv2d_forward.1} parent=31 // pred_region
              // Predicated region
              $region48: #{_deconv2d_forward.1} parent=35 // pred_check
                _
              $region49: #{_deconv2d_forward.1} parent=35 // pred_check_branch
                %158 = sbr.rel (0) target = $region51
              $region50: #{_deconv2d_forward.1} parent=35 // pred_region
                loop: start=0, step=1, limit=1
                $region52: #{_deconv2d_forward.1} parent=50 // loop_pre_header
                  _
                $region53: #{_deconv2d_forward.1} parent=50 // loop_header
                  %s160 = sphi 0, %s164
                  %p161 = scmp.ge.s32.totalorder %s160, 1
                  %s165 = sphi %s137, %s137
                  %s166 = sphi %s134, %s134
                $region54: #{_deconv2d_forward.1} parent=50 // loop_header_branch
                  %163 = sbr.rel (%p161) target = $region58
                $region55: #{_deconv2d_forward.1} parent=50 // loop_body
                  %v167 = vld [vmem:[%s165] sm:$0xff]
                  %168 = vst [vmem:[%s166] sm:$0xff] %v167
                  %v169 = vld [vmem:[%s165 + $0x10] sm:$0xff]
                  %170 = vst [vmem:[%s166 + $0x8] sm:$0xff] %v169
                $region56: #{_deconv2d_forward.1} parent=50 // loop_footer
                  %s164 = sadd.s32 1, %s160
                $region57: #{_deconv2d_forward.1} parent=50 // loop_footer_branch
                  %159 = sbr.rel target = $region53
                $region58: #{_deconv2d_forward.1} parent=50 // loop_exit
                  _
              $region51: #{_deconv2d_forward.1} parent=35 // pred_fallthru
                _
              // Predicated region
              $region59: #{_deconv2d_forward.1} parent=35 // pred_check
                _
              $region60: #{_deconv2d_forward.1} parent=35 // pred_check_branch
                %172 = sbr.rel target = $region62
              $region61: #{_deconv2d_forward.1} parent=35 // pred_region
                _
              $region62: #{_deconv2d_forward.1} parent=35 // pred_fallthru
                _
            $region36: #{_deconv2d_forward.1} parent=31 // pred_fallthru
              _
            // Predicated region
            $region37: #{_deconv2d_forward.1} parent=31 // pred_check
              _
            $region38: #{_deconv2d_forward.1} parent=31 // pred_check_branch
              %143 = sbr.rel target = $region40
            $region39: #{_deconv2d_forward.1} parent=31 // pred_region
              loop: start=0, step=1, limit=1
              $region41: #{_deconv2d_forward.1} parent=39 // loop_pre_header
                _
              $region42: #{_deconv2d_forward.1} parent=39 // loop_header
                %s146 = sphi 0, %s150
                %p147 = scmp.ge.s32.totalorder %s146, 1
                %s151 = sphi %s137, %s137
                %s152 = sphi %s134, %s134
              $region43: #{_deconv2d_forward.1} parent=39 // loop_header_branch
                %149 = sbr.rel (%p147) target = $region47
              $region44: #{_deconv2d_forward.1} parent=39 // loop_body
                %v153 = vld [vmem:[%s151] sm:$0xff]
                %154 = vst [vmem:[%s152] sm:$0xff] %v153
                %v155 = vld [vmem:[%s151 + $0x10] sm:$0xff]
                %156 = vst [vmem:[%s152 + $0x8] sm:$0xff] %v155
              $region45: #{_deconv2d_forward.1} parent=39 // loop_footer
                %s150 = sadd.s32 1, %s146
              $region46: #{_deconv2d_forward.1} parent=39 // loop_footer_branch
                %145 = sbr.rel target = $region42
              $region47: #{_deconv2d_forward.1} parent=39 // loop_exit
                _
            $region40: #{_deconv2d_forward.1} parent=31 // pred_fallthru
              _
          $region32: #{_deconv2d_forward.1} parent=27 // pred_fallthru
            _
          %173 = vnop
        $region28: #{_deconv2d_forward.1} parent=23 // pred_fallthru
          _
      $region24: #{_deconv2d_forward.1} parent=5 // pred_fallthru
        _
      %p174 = scmp.le.s32.totalorder 1, %s9
      %p175 = scmp.lt.s32.totalorder %s9, 3
      %p176 = pnand %p174, %p175
      %p177 = pneg %p176
      // Predicated region
      $region63: #{_deconv2d_forward.1} parent=5 // pred_check
        _
      $region64: #{_deconv2d_forward.1} parent=5 // pred_check_branch
        %179 = sbr.rel (%p176) target = $region66
      $region65: #{_deconv2d_forward.1} parent=5 // pred_region
        %s180 = ssub.s32 %s9, 1
        %s181 = sand.u32 %s64, 1
        %s182 = sand.u32 %s64, 1
        %s183 = smul.addr %s182, 16
        %s184 = scalar_lea.vmem [#allocation2], %s183
        // Predicated region
        $region67: #{_deconv2d_forward.1} parent=65 // pred_check
          %p185 = pneg %p77
        $region68: #{_deconv2d_forward.1} parent=65 // pred_check_branch
          %187 = sbr.rel (%p185) target = $region70
        $region69: #{_deconv2d_forward.1} parent=65 // pred_region
          _
        $region70: #{_deconv2d_forward.1} parent=65 // pred_fallthru
          _
        %p188 = pneg %p30
        %p189 = pneg %p27
        %p190 = pneg %p51
        %p191 = pneg %p48
        %s192 = sand.u32 %s64, 1
        %s193 = sand.u32 %s64, 1
        %s194 = smul.addr %s193, 16
        %s195 = scalar_lea.vmem [#allocation2], %s194
        %p196 = pneg %p77
        %p197 = pneg %p74
        %p198 = pneg %p103
        %p199 = pneg %p100
        %s200 = sand.u32 %s90, 1
        %s201 = sand.u32 %s90, 1
        %s202 = smul.addr %s201, 32
        %s203 = scalar_lea.vmem [#allocation3], %s202
        %s204 = smul.u32 2, %s14
        %s205 = smul.u32 2, %s14
        %v207 = vld [vmem:[%s0] sm:$0xf]
        %v208 = vld [vmem:[%s0 + $0x4] sm:$0xf]
        %v209 = vld [vmem:[%s0 + $0x8] sm:$0xf]
        %v210 = vld [vmem:[%s0 + $0xc] sm:$0xf]
        %v211 = vld [vmem:[%s184] sm:$0xff]
        %v212 = vld [vmem:[%s184 + $0x8] sm:$0xff]
        %v213 = vld [vmem:[%s1] sm:$0xff]
        %v214 = vld [vmem:[%s1 + $0x8] sm:$0xff]
        %v215 = vld [vmem:[%s1 + $0x10] sm:$0xff]
        %v216 = vld [vmem:[%s1 + $0x18] sm:$0xff]
        %218 = vset.pattern.permute.xlu0 0
        %219 = vperm.xlu0 %218, %v213
        %v220 = vpop.permute.xlu0 %219
        %223 = vset.pattern.permute.xlu0 0
        %224 = vperm.xlu0 %223, %v214
        %v225 = vpop.permute.xlu0 %224
        %228 = vset.pattern.permute.xlu0 0
        %229 = vperm.xlu0 %228, %v215
        %v230 = vpop.permute.xlu0 %229
        %233 = vset.pattern.permute.xlu0 0
        %234 = vperm.xlu0 %233, %v216
        %v235 = vpop.permute.xlu0 %234
        %v241 = vunpack.c.l.b16 %v207
        %v242 = vunpack.c.l.b16 %v208
        %v243 = vunpack.c.l.b16 %v209
        %v244 = vunpack.c.l.b16 %v210
        %v245 = vpack.c.b16 %v242, %v241
        %v246 = vpack.c.b16 %v244, %v243
        %v249 = vunpack.c.l.b16 %v211
        %v250 = vunpack.c.h.b16 %v211
        %v251 = vunpack.c.l.b16 %v212
        %v252 = vunpack.c.h.b16 %v212
        %v253 = vpack.c.b16 %v251, %v249
        %v254 = vpack.c.b16 %v252, %v250
        %vm257 = vcmask 130048
        %v259 = vsel %vm257, %v245, 0
        %v262 = vsel %vm257, %v246, 0
        %264 = vmatprep.subr.bf16.mxu0 %v254
        %265 = vmatpush1.bf16.msra.mxu0 %v253
        %266 = vmatprep.subr.bf16.mxu0 0
        %267 = vmatpush1.bf16.msra.mxu0 0
        %268 = vmatprep.subr.bf16.mxu0 0
        %269 = vmatpush1.bf16.msra.mxu0 0
        %270 = vmatprep.subr.bf16.mxu0 0
        %271 = vmatpush1.bf16.msra.mxu0 0
        %272 = vmatprep.subr.bf16.mxu0 0
        %273 = vmatpush1.bf16.msra.mxu0 0
        %274 = vmatprep.subr.bf16.mxu0 0
        %275 = vmatpush1.bf16.msra.mxu0 0
        %276 = vmatprep.subr.bf16.mxu0 0
        %277 = vmatpush1.bf16.msra.mxu0 0
        %278 = vmatprep.subr.bf16.mxu0 0
        %279 = vmatpush1.bf16.msra.mxu0 0
        %280 = vmatprep.subr.bf16.mxu0 0
        %281 = vmatpush1.bf16.msra.mxu0 0
        %282 = vmatprep.subr.bf16.mxu0 0
        %283 = vmatpush1.bf16.msra.mxu0 0
        %284 = vmatprep.subr.bf16.mxu0 0
        %285 = vmatpush1.bf16.msra.mxu0 0
        %286 = vmatprep.subr.bf16.mxu0 0
        %287 = vmatpush1.bf16.msra.mxu0 0
        %288 = vmatprep.subr.bf16.mxu0 0
        %289 = vmatpush1.bf16.msra.mxu0 0
        %290 = vmatprep.subr.bf16.mxu0 0
        %291 = vmatpush1.bf16.msra.mxu0 0
        %292 = vmatprep.subr.bf16.mxu0 0
        %293 = vmatpush1.bf16.msra.mxu0 0
        %294 = vmatprep.subr.bf16.mxu0 0
        %295 = vmatpush1.bf16.msra.mxu0 0
        %296 = vmatprep.mubr.bf16.mxu0 0
        %297 = vmatmul.mubr.bf16.gmra.mrb[0].mxu0 %v259
        %v298 = vpop.f32.mrb[0].mxu0
        %v299 = vadd.f32 %v220, %v298
        %v300 = vpop.f32.mrb[0].mxu0
        %v301 = vadd.f32 %v220, %v300
        %v302 = vpop.f32.mrb[0].mxu0
        %v303 = vadd.f32 %v225, %v302
        %v304 = vpop.f32.mrb[0].mxu0
        %v305 = vadd.f32 %v225, %v304
        %306 = vmatprep.mubr.bf16.mxu0 0
        %307 = vmatmul.mubr.bf16.gmra.mrb[0].mxu0 %v262
        %v308 = vpop.f32.mrb[0].mxu0
        %v309 = vadd.f32 %v230, %v308
        %v310 = vpop.f32.mrb[0].mxu0
        %v311 = vadd.f32 %v230, %v310
        %v312 = vpop.f32.mrb[0].mxu0
        %v313 = vadd.f32 %v235, %v312
        %v314 = vpop.f32.mrb[0].mxu0
        %v315 = vadd.f32 %v235, %v314
        %316 = vdwg.mxu0
        %v317 = vpack.c.bf16 %v303, %v299
        %v318 = vpack.c.bf16 %v305, %v301
        %v319 = vpack.c.bf16 %v313, %v309
        %v320 = vpack.c.bf16 %v315, %v311
        %v325 = vunpack.c.l.b16 %v317
        %v326 = vunpack.c.l.b16 %v318
        %v327 = vunpack.c.h.b16 %v317
        %v328 = vunpack.c.h.b16 %v318
        %v329 = vunpack.c.l.b16 %v319
        %v330 = vunpack.c.l.b16 %v320
        %v331 = vunpack.c.h.b16 %v319
        %v332 = vunpack.c.h.b16 %v320
        %v333 = vpack.c.b16 %v326, %v325
        %v334 = vpack.c.b16 %v328, %v327
        %v335 = vpack.c.b16 %v330, %v329
        %v336 = vpack.c.b16 %v332, %v331
        %341 = vst [vmem:[%s203] sm:$0xff] %v333
        %342 = vst [vmem:[%s203 + $0x8] sm:$0xff] %v334
        %343 = vst [vmem:[%s203 + $0x10] sm:$0xff] %v335
        %344 = vst [vmem:[%s203 + $0x18] sm:$0xff] %v336
        %s345 = sand.u32 %s90, 1
        %s346 = sand.u32 %s90, 1
        %s347 = smul.addr %s346, 32
        %s348 = scalar_lea.vmem [#allocation3], %s347
        // Predicated region
        $region71: #{_deconv2d_forward.1} parent=65 // pred_check
          %p349 = pneg %p100
        $region72: #{_deconv2d_forward.1} parent=65 // pred_check_branch
          %351 = sbr.rel (%p349) target = $region74
        $region73: #{_deconv2d_forward.1} parent=65 // pred_region
          %s352 = smul.u32 2, %s14
          %s353 = smul.addr %s352, 4
          %s354 = scalar_lea.vmem %s3, %s353
          // Predicated region
          $region75: #{_deconv2d_forward.1} parent=73 // pred_check
            _
          $region76: #{_deconv2d_forward.1} parent=73 // pred_check_branch
            %356 = sbr.rel (0) target = $region78
          $region77: #{_deconv2d_forward.1} parent=73 // pred_region
            // Predicated region
            $region79: #{_deconv2d_forward.1} parent=77 // pred_check
              _
            $region80: #{_deconv2d_forward.1} parent=77 // pred_check_branch
              %358 = sbr.rel (0) target = $region82
            $region81: #{_deconv2d_forward.1} parent=77 // pred_region
              // Predicated region
              $region94: #{_deconv2d_forward.1} parent=81 // pred_check
                _
              $region95: #{_deconv2d_forward.1} parent=81 // pred_check_branch
                %379 = sbr.rel (0) target = $region97
              $region96: #{_deconv2d_forward.1} parent=81 // pred_region
                loop: start=0, step=1, limit=1
                $region98: #{_deconv2d_forward.1} parent=96 // loop_pre_header
                  _
                $region99: #{_deconv2d_forward.1} parent=96 // loop_header
                  %s381 = sphi 0, %s385
                  %p382 = scmp.ge.s32.totalorder %s381, 1
                  %s386 = sphi %s348, %s348
                  %s387 = sphi %s354, %s354
                $region100: #{_deconv2d_forward.1} parent=96 // loop_header_branch
                  %384 = sbr.rel (%p382) target = $region104
                $region101: #{_deconv2d_forward.1} parent=96 // loop_body
                  %v388 = vld [vmem:[%s386] sm:$0xff]
                  %389 = vst [vmem:[%s387] sm:$0xff] %v388
                  %v390 = vld [vmem:[%s386 + $0x8] sm:$0xff]
                  %391 = vst [vmem:[%s387 + $0x10] sm:$0xff] %v390
                  %v392 = vld [vmem:[%s386 + $0x10] sm:$0xff]
                  %393 = vst [vmem:[%s387 + $0x20] sm:$0xff] %v392
                  %v394 = vld [vmem:[%s386 + $0x18] sm:$0xff]
                  %395 = vst [vmem:[%s387 + $0x30] sm:$0xff] %v394
                $region102: #{_deconv2d_forward.1} parent=96 // loop_footer
                  %s385 = sadd.s32 1, %s381
                $region103: #{_deconv2d_forward.1} parent=96 // loop_footer_branch
                  %380 = sbr.rel target = $region99
                $region104: #{_deconv2d_forward.1} parent=96 // loop_exit
                  _
              $region97: #{_deconv2d_forward.1} parent=81 // pred_fallthru
                _
              // Predicated region
              $region105: #{_deconv2d_forward.1} parent=81 // pred_check
                _
              $region106: #{_deconv2d_forward.1} parent=81 // pred_check_branch
                %397 = sbr.rel target = $region108
              $region107: #{_deconv2d_forward.1} parent=81 // pred_region
                _
              $region108: #{_deconv2d_forward.1} parent=81 // pred_fallthru
                _
            $region82: #{_deconv2d_forward.1} parent=77 // pred_fallthru
              _
            // Predicated region
            $region83: #{_deconv2d_forward.1} parent=77 // pred_check
              _
            $region84: #{_deconv2d_forward.1} parent=77 // pred_check_branch
              %360 = sbr.rel target = $region86
            $region85: #{_deconv2d_forward.1} parent=77 // pred_region
              loop: start=0, step=1, limit=1
              $region87: #{_deconv2d_forward.1} parent=85 // loop_pre_header
                _
              $region88: #{_deconv2d_forward.1} parent=85 // loop_header
                %s363 = sphi 0, %s367
                %p364 = scmp.ge.s32.totalorder %s363, 1
                %s368 = sphi %s348, %s348
                %s369 = sphi %s354, %s354
              $region89: #{_deconv2d_forward.1} parent=85 // loop_header_branch
                %366 = sbr.rel (%p364) target = $region93
              $region90: #{_deconv2d_forward.1} parent=85 // loop_body
                %v370 = vld [vmem:[%s368] sm:$0xff]
                %371 = vst [vmem:[%s369] sm:$0xff] %v370
                %v372 = vld [vmem:[%s368 + $0x8] sm:$0xff]
                %373 = vst [vmem:[%s369 + $0x10] sm:$0xff] %v372
                %v374 = vld [vmem:[%s368 + $0x10] sm:$0xff]
                %375 = vst [vmem:[%s369 + $0x20] sm:$0xff] %v374
                %v376 = vld [vmem:[%s368 + $0x18] sm:$0xff]
                %377 = vst [vmem:[%s369 + $0x30] sm:$0xff] %v376
              $region91: #{_deconv2d_forward.1} parent=85 // loop_footer
                %s367 = sadd.s32 1, %s363
              $region92: #{_deconv2d_forward.1} parent=85 // loop_footer_branch
                %362 = sbr.rel target = $region88
              $region93: #{_deconv2d_forward.1} parent=85 // loop_exit
                _
            $region86: #{_deconv2d_forward.1} parent=77 // pred_fallthru
              _
          $region78: #{_deconv2d_forward.1} parent=73 // pred_fallthru
            _
          %398 = vnop
        $region74: #{_deconv2d_forward.1} parent=65 // pred_fallthru
          _
      $region66: #{_deconv2d_forward.1} parent=5 // pred_fallthru
        _
      %p399 = scmp.le.s32.totalorder 2, %s9
      // Predicated region
      $region109: #{_deconv2d_forward.1} parent=5 // pred_check
        %p400 = pneg %p399
      $region110: #{_deconv2d_forward.1} parent=5 // pred_check_branch
        %402 = sbr.rel (%p400) target = $region112
      $region111: #{_deconv2d_forward.1} parent=5 // pred_region
        %s403 = ssub.s32 %s9, 2
        // Predicated region
        $region113: #{_deconv2d_forward.1} parent=111 // pred_check
          %p404 = pneg %p106
        $region114: #{_deconv2d_forward.1} parent=111 // pred_check_branch
          %406 = sbr.rel (%p404) target = $region116
        $region115: #{_deconv2d_forward.1} parent=111 // pred_region
          %s407 = sand.u32 %s91, 1
          %s408 = sand.u32 %s91, 1
          %s409 = smul.addr %s408, 32
          %s410 = scalar_lea.vmem [#allocation3], %s409
        $region116: #{_deconv2d_forward.1} parent=111 // pred_fallthru
          _
      $region112: #{_deconv2d_forward.1} parent=5 // pred_fallthru
        _
    $region6: #{_deconv2d_forward.1} parent=1 // loop_footer
      %s13 = sadd.s32 1, %s9
    $region7: #{_deconv2d_forward.1} parent=1 // loop_footer_branch
      %8 = sbr.rel target = $region3
    $region8: #{_deconv2d_forward.1} parent=1 // loop_exit
      _

</llo_original>
